<compile_context>
chip_gen: v5e
topology: v5e:2x2
jax: 0.10.0
libtpu: 0.0.40
codegen_flags: <defaults>
</compile_context>

<pallas_src>
import functools

import jax
import jax.numpy as jnp
from jax.experimental import pallas as pl
from jax.experimental.pallas import tpu as pltpu

LN_EPS = 1e-5  # PyTorch nn.LayerNorm default eps


# --------------------------------------------------------------------------- #
# Kernel
# --------------------------------------------------------------------------- #
def _ln_relu_hidden(h, g, b, bf16_tail):
    """LayerNorm -> ReLU -> bf16 for the hidden layers.

    Decorrelated reductions (var = E[h^2] - mu^2, clamped) let the two XLU lane
    reductions overlap; on chips with bf16 VALU the *gamma+beta / ReLU tail runs
    in bf16 (the result feeds a bf16 matmul operand anyway).
    """
    mu = jnp.mean(h, axis=-1, keepdims=True)
    ms = jnp.mean(h * h, axis=-1, keepdims=True)
    var = jnp.maximum(ms - mu * mu, 0.0)
    n = (h - mu) * jax.lax.rsqrt(var + LN_EPS)
    if bf16_tail:
        n = n.astype(jnp.bfloat16)
        g = g.astype(jnp.bfloat16)
        b = b.astype(jnp.bfloat16)
        return jnp.maximum(n * g + b, 0.0)
    return jnp.maximum(n * g + b, 0.0).astype(jnp.bfloat16)


def _layernorm_final(h, g, b):
    """Two-pass (numerically safe) f32 LayerNorm for the projector output."""
    mu = jnp.mean(h, axis=-1, keepdims=True)
    d = h - mu
    var = jnp.mean(d * d, axis=-1, keepdims=True)
    return d * jax.lax.rsqrt(var + LN_EPS) * g + b


def _encoder_kernel(widths, bf16_tail, p_ref, a_ref, t_ref, ov_ref,
                    w1p_ref, w1a_ref, w2_ref, w3_ref, w4_ref, vec_ref, o_ref):
    L0, L1, L2, C = widths

    pt = t_ref[...]                        # (tm, 1) f32 particle types
    mask = pt == 1.0                       # exact f32 compare (no bf16 rounding)

    def vrow(r, w):                        # (1, w) f32 row of the packed vec slab
        return vec_ref[r:r + 1, :w]

    # --- layer 1: Linear(in_ch, L0); torch.cat fused as partial matmuls against
    #     row-blocks of W1 (bf16 MXU operands, f32 accumulation).
    acc = jnp.dot(p_ref[...].astype(jnp.bfloat16), w1p_ref[...],
                  preferred_element_type=jnp.float32)
    acc = acc + jnp.dot(a_ref[...].astype(jnp.bfloat16), w1a_ref[...],
                        preferred_element_type=jnp.float32)
    acc = acc + pt * vrow(12, L0)          # particle_types row of W1 (0/1 gate, f32)
    acc = acc + vrow(0, L0)
    h = _ln_relu_hidden(acc, vrow(1, L0), vrow(2, L0), bf16_tail)

    # --- layers 2-3
    acc = jnp.dot(h, w2_ref[...], preferred_element_type=jnp.float32) + vrow(3, L1)
    h = _ln_relu_hidden(acc, vrow(4, L1), vrow(5, L1), bf16_tail)
    acc = jnp.dot(h, w3_ref[...], preferred_element_type=jnp.float32) + vrow(6, L2)
    h = _ln_relu_hidden(acc, vrow(7, L2), vrow(8, L2), bf16_tail)

    # --- layer 4: projector Linear(L2, C) + LayerNorm (no ReLU), f32 tail.
    acc = jnp.dot(h, w4_ref[...], preferred_element_type=jnp.float32) + vrow(9, C)
    y = _layernorm_final(acc, vrow(10, C), vrow(11, C))

    # pred_points[particle_types == 1] = particles[particle_types == 1, :, -1]
    # TODO(synk): if a profile shows the 4-lane-wide store is a visible cost,
    # repack mask/override/y into a lane-dense (tm//32, 128) slab before storing.
    o_ref[...] = jnp.where(mask, ov_ref[...], y).astype(o_ref.dtype)


# --------------------------------------------------------------------------- #
# Parameters (one-time packing, hoisted out of the per-call path)
# --------------------------------------------------------------------------- #
def init_params(key, in_channels, out_channels, layer_size=(64, 128, 256)):
    """Deterministic synthetic params matching the PyTorch module's shapes."""
    assert len(layer_size) == 3
    dims = (in_channels,) + tuple(layer_size) + (out_channels,)
    params = {}
    keys = jax.random.split(key, 8)
    for i in range(4):
        fan_in, fan_out = dims[i], dims[i + 1]
        bound = 1.0 / float(fan_in) ** 0.5
        params[f"w{i + 1}"] = jax.random.uniform(
            keys[2 * i], (fan_in, fan_out), jnp.float32, -bound, bound)
        params[f"b{i + 1}"] = jax.random.uniform(
            keys[2 * i + 1], (1, fan_out), jnp.float32, -bound, bound)
        params[f"g{i + 1}"] = jnp.ones((1, fan_out), jnp.float32)    # LayerNorm gamma
        params[f"be{i + 1}"] = jnp.zeros((1, fan_out), jnp.float32)  # LayerNorm beta
    return params


def prepare_params(params, n_particle_feats, n_action_feats):
    """Pack weights/vectors ONCE (bf16 weight row-blocks + one f32 vector slab)."""
    in_ch = params["w1"].shape[0]
    assert in_ch == n_particle_feats + n_action_feats + 1
    widths = tuple(int(params[f"w{i}"].shape[1]) for i in (1, 2, 3, 4))
    padw = ((max(widths) + 127) // 128) * 128

    vec = jnp.zeros((16, padw), jnp.float32)
    for li in range(4):
        w = widths[li]
        vec = vec.at[3 * li + 0, :w].set(params[f"b{li + 1}"].reshape(-1))
        vec = vec.at[3 * li + 1, :w].set(params[f"g{li + 1}"].reshape(-1))
        vec = vec.at[3 * li + 2, :w].set(params[f"be{li + 1}"].reshape(-1))
    # Row 12: the particle_types row of W1, kept in f32 and applied in-kernel as a
    # 0/1-gated broadcast add (cheaper and more exact than an MXU K=1 matmul).
    vec = vec.at[12, :widths[0]].set(params["w1"][in_ch - 1, :])

    w1 = params["w1"]
    return {
        "w1p": w1[:n_particle_feats].astype(jnp.bfloat16),
        "w1a": w1[n_particle_feats:n_particle_feats + n_action_feats].astype(jnp.bfloat16),
        "w2": params["w2"].astype(jnp.bfloat16),
        "w3": params["w3"].astype(jnp.bfloat16),
        "w4": params["w4"].astype(jnp.bfloat16),
        "vec": vec,
    }


# --------------------------------------------------------------------------- #
# Wrapper
# --------------------------------------------------------------------------- #
def _has_bf16_valu():
    """bf16 VALU lanes exist on v6e and later; v5e and older widen to f32."""
    try:
        kind = jax.devices()[0].device_kind.lower()
    except Exception:
        return False
    return not any(tag in kind for tag in ("v2", "v3", "v4", "v5"))


def _choose_tm(M):
    """Large row tiles amortize the ~0.35us per-grid-step overhead; keep >= 4 grid
    steps whenever possible so v7x's 2 TensorCores each get >= 2 pipelined steps."""
    tm = 2048                       # per-step VMEM stays well under the 40 MiB limit
    while tm > 8 and 4 * tm > M:
        tm //= 2
    return max(tm, 8)


@functools.partial(jax.jit, static_argnames=("tm", "bf16_tail"))
def pointcloud_encoder(particles, action, particle_types, packed, *,
                       tm=None, bf16_tail=None):
    B, N, T, _ = particles.shape
    P = T * 3
    A = action.shape[-1]
    M = B * N

    L0 = packed["w1p"].shape[1]
    widths = (L0, packed["w2"].shape[1], packed["w3"].shape[1], packed["w4"].shape[1])
    C = widths[3]
    # The torch masked assignment writes a [K, T] slab into [K, out_channels].
    assert C == T, "masked override in the reference module requires out_channels == T"
    assert packed["w1p"].shape[0] == P and packed["w1a"].shape[0] == A

    # Free reshapes only; the single wrapper-side copy is the tiny (M, T) override
    # slice (particles[..., :, -1], kept f32 so masked rows are an exact passthrough).
    p2 = particles.reshape(M, P)
    a2 = action.reshape(M, A)
    t2 = particle_types.reshape(M, 1).astype(jnp.float32)
    ov = particles[..., -1].reshape(M, T).astype(jnp.float32)

    if bf16_tail is None:
        bf16_tail = _has_bf16_valu()
    if tm is None:
        tm = _choose_tm(M)
    grid = pl.cdiv(M, tm)   # no jnp.pad: Pallas masks the ragged trailing block

    kernel = functools.partial(_encoder_kernel, widths, bool(bf16_tail))

    out = pl.pallas_call(
        kernel,
        out_shape=jax.ShapeDtypeStruct((M, C), jnp.float32),
        grid_spec=pltpu.PrefetchScalarGridSpec(
            num_scalar_prefetch=0,
            grid=(grid,),
            in_specs=[
                pl.BlockSpec((tm, P), lambda i: (i, 0)),
                pl.BlockSpec((tm, A), lambda i: (i, 0)),
                pl.BlockSpec((tm, 1), lambda i: (i, 0)),
                pl.BlockSpec((tm, T), lambda i: (i, 0)),
                # Resident parameters: constant index_map -> DMA'd once at step 0
                # and reused every step (second buffer waste is ~100 KB; default
                # buffering kept for lowering robustness).
                pl.BlockSpec(packed["w1p"].shape, lambda i: (0, 0)),
                pl.BlockSpec(packed["w1a"].shape, lambda i: (0, 0)),
                pl.BlockSpec(packed["w2"].shape, lambda i: (0, 0)),
                pl.BlockSpec(packed["w3"].shape, lambda i: (0, 0)),
                pl.BlockSpec(packed["w4"].shape, lambda i: (0, 0)),
                pl.BlockSpec(packed["vec"].shape, lambda i: (0, 0)),
            ],
            out_specs=pl.BlockSpec((tm, C), lambda i: (i, 0)),
        ),
        compiler_params=pltpu.CompilerParams(
            dimension_semantics=("parallel",),
            # Explicit limit so v5e's 16 MiB default scoped VMEM doesn't constrain
            # the tm=2048 tiles; ~40 MiB is still below every chip's physical VMEM.
            vmem_limit_bytes=40 * 1024 * 1024,
        ),
    )(p2, a2, t2, ov,
      packed["w1p"], packed["w1a"], packed["w2"], packed["w3"], packed["w4"],
      packed["vec"])

    return out.reshape(B, N, C)


# --------------------------------------------------------------------------- #
# Pure-JAX reference (faithful to the PyTorch forward)
# --------------------------------------------------------------------------- #
def _reference(particles, action, particle_types, params, *, bf16_matmul=False):
    B, N, T, _ = particles.shape
    points = jnp.concatenate(
        [particles.reshape(B, N, T * 3),
         action,
         particle_types.reshape(B, N, 1).astype(particles.dtype)],
        axis=-1)
    h = points.astype(jnp.float32)
    for li, relu in ((1, True), (2, True), (3, True), (4, False)):
        w = params[f"w{li}"]
        if bf16_matmul:
            h = jnp.dot(h.astype(jnp.bfloat16), w.astype(jnp.bfloat16),
                        preferred_element_type=jnp.float32)
        else:
            h = jnp.dot(h, w)
        h = h + params[f"b{li}"]
        mu = jnp.mean(h, axis=-1, keepdims=True)
        var = jnp.mean((h - mu) ** 2, axis=-1, keepdims=True)
        h = (h - mu) / jnp.sqrt(var + LN_EPS) * params[f"g{li}"] + params[f"be{li}"]
        if relu:
            h = jnp.maximum(h, 0.0)
    mask = (particle_types == 1.0)[..., None]
    return jnp.where(mask, particles[..., -1], h)


# --------------------------------------------------------------------------- #
# Demo / self-check
# --------------------------------------------------------------------------- #
if __name__ == "__main__":
    key = jax.random.PRNGKey(0)
    k_p, k_a, k_t, k_w = jax.random.split(key, 4)

    B, N, T, A = 2, 16, 4, 3
    in_channels = T * 3 + A + 1      # = 16
    out_channels = T                 # required by the masked-assignment semantics
    layer_size = (64, 128, 256)

    particles = jax.random.normal(k_p, (B, N, T, 3), jnp.float32)
    action = jax.random.normal(k_a, (B, N, A), jnp.float32)
    particle_types = jax.random.bernoulli(k_t, 0.3, (B, N)).astype(jnp.float32)

    params = init_params(k_w, in_channels, out_channels, layer_size)
    packed = prepare_params(params, n_particle_feats=T * 3, n_action_feats=A)

    out = pointcloud_encoder(particles, action, particle_types, packed)
    out = jax.block_until_ready(out)
    assert out.shape == (B, N, out_channels)
    assert bool(jnp.all(jnp.isfinite(out))), "non-finite output"

    # Check vs a reference that also uses bf16 matmul operands (f32 accumulation).
    ref_bf16 = _reference(particles, action, particle_types, params, bf16_matmul=True)
    assert jnp.allclose(out, ref_bf16, rtol=3e-2, atol=3e-2), "mismatch vs bf16 reference"

    # Loose check vs the full-f32 reference.
    ref_f32 = _reference(particles, action, particle_types, params, bf16_matmul=False)
    assert jnp.allclose(out, ref_f32, rtol=1e-1, atol=1e-1), "mismatch vs f32 reference"

    # Masked rows are an exact passthrough of particles[..., :, -1].
    m = (particle_types == 1.0)
    assert jnp.allclose(out[m], particles[..., -1][m]), "masked override mismatch"

    print("KERNEL_OK")
</pallas_src>

<mosaic_0001>
module attributes {stable_mosaic.version = 11 : i64} {
  func.func @_encoder_kernel(%arg0: i32, %arg1: memref<8x12xf32, #tpu.memory_space<vmem>>, %arg2: memref<8x3xf32, #tpu.memory_space<vmem>>, %arg3: memref<8x1xf32, #tpu.memory_space<vmem>>, %arg4: memref<8x4xf32, #tpu.memory_space<vmem>>, %arg5: memref<12x64xbf16, #tpu.memory_space<vmem>>, %arg6: memref<3x64xbf16, #tpu.memory_space<vmem>>, %arg7: memref<64x128xbf16, #tpu.memory_space<vmem>>, %arg8: memref<128x256xbf16, #tpu.memory_space<vmem>>, %arg9: memref<256x4xbf16, #tpu.memory_space<vmem>>, %arg10: memref<16x256xf32, #tpu.memory_space<vmem>>, %arg11: memref<8x4xf32, #tpu.memory_space<vmem>>) attributes {dimension_semantics = [#tpu.dimension_semantics<parallel>], iteration_bounds = array<i64: 4>, scalar_prefetch = 0 : i64, scratch_operands = 0 : i64, tpu.core_type = #tpu.core_type<tc>, window_params = [{transform_indices = @transform_0, window_bounds = array<i64: 8, 12>}, {transform_indices = @transform_1, window_bounds = array<i64: 8, 3>}, {transform_indices = @transform_2, window_bounds = array<i64: 8, 1>}, {transform_indices = @transform_3, window_bounds = array<i64: 8, 4>}, {pipeline_mode = #tpu.pipeline_mode<synchronous>, transform_indices = @transform_4, window_bounds = array<i64: 12, 64>}, {pipeline_mode = #tpu.pipeline_mode<synchronous>, transform_indices = @transform_5, window_bounds = array<i64: 3, 64>}, {pipeline_mode = #tpu.pipeline_mode<synchronous>, transform_indices = @transform_6, window_bounds = array<i64: 64, 128>}, {pipeline_mode = #tpu.pipeline_mode<synchronous>, transform_indices = @transform_7, window_bounds = array<i64: 128, 256>}, {pipeline_mode = #tpu.pipeline_mode<synchronous>, transform_indices = @transform_8, window_bounds = array<i64: 256, 4>}, {pipeline_mode = #tpu.pipeline_mode<synchronous>, transform_indices = @transform_9, window_bounds = array<i64: 16, 256>}, {transform_indices = @transform_10, window_bounds = array<i64: 8, 4>}]} {
    %c0 = arith.constant 0 : index
    %c0_0 = arith.constant 0 : index
    %0 = vector.load %arg3[%c0, %c0_0] : memref<8x1xf32, #tpu.memory_space<vmem>>, vector<8x1xf32>
    %cst = arith.constant 1.000000e+00 : f32
    %1 = vector.broadcast %cst : f32 to vector<8x1xf32>
    %2 = arith.cmpf oeq, %0, %1 : vector<8x1xf32>
    %c0_1 = arith.constant 0 : index
    %c0_2 = arith.constant 0 : index
    %3 = vector.load %arg1[%c0_1, %c0_2] : memref<8x12xf32, #tpu.memory_space<vmem>>, vector<8x12xf32>
    %4 = arith.truncf %3 : vector<8x12xf32> to vector<8x12xbf16>
    %c0_3 = arith.constant 0 : index
    %c0_4 = arith.constant 0 : index
    %5 = vector.load %arg5[%c0_3, %c0_4] : memref<12x64xbf16, #tpu.memory_space<vmem>>, vector<12x64xbf16>
    %cst_5 = arith.constant dense<0.000000e+00> : vector<8x64xf32>
    %6 = tpu.matmul %4, %5, %cst_5 {dimension_numbers = #tpu.dot_dimension_numbers<[1], [0], [0], [1], [0, 0, 1, 1], [], []>} : vector<8x12xbf16>, vector<12x64xbf16>, vector<8x64xf32> -> vector<8x64xf32>
    %c0_6 = arith.constant 0 : index
    %c0_7 = arith.constant 0 : index
    %7 = vector.load %arg2[%c0_6, %c0_7] : memref<8x3xf32, #tpu.memory_space<vmem>>, vector<8x3xf32>
    %8 = arith.truncf %7 : vector<8x3xf32> to vector<8x3xbf16>
    %c0_8 = arith.constant 0 : index
    %c0_9 = arith.constant 0 : index
    %9 = vector.load %arg6[%c0_8, %c0_9] : memref<3x64xbf16, #tpu.memory_space<vmem>>, vector<3x64xbf16>
    %cst_10 = arith.constant dense<0.000000e+00> : vector<8x64xf32>
    %10 = tpu.matmul %8, %9, %cst_10 {dimension_numbers = #tpu.dot_dimension_numbers<[1], [0], [0], [1], [0, 0, 1, 1], [], []>} : vector<8x3xbf16>, vector<3x64xbf16>, vector<8x64xf32> -> vector<8x64xf32>
    %11 = arith.addf %6, %10 : vector<8x64xf32>
    %c12 = arith.constant 12 : index
    %c0_11 = arith.constant 0 : index
    %12 = vector.load %arg10[%c12, %c0_11] : memref<16x256xf32, #tpu.memory_space<vmem>>, vector<1x64xf32>
    %13 = vector.broadcast %0 : vector<8x1xf32> to vector<8x64xf32>
    %14 = vector.broadcast %12 : vector<1x64xf32> to vector<8x64xf32>
    %15 = arith.mulf %13, %14 : vector<8x64xf32>
    %16 = arith.addf %11, %15 : vector<8x64xf32>
    %c0_12 = arith.constant 0 : index
    %c0_13 = arith.constant 0 : index
    %17 = vector.load %arg10[%c0_12, %c0_13] : memref<16x256xf32, #tpu.memory_space<vmem>>, vector<1x64xf32>
    %18 = vector.broadcast %17 : vector<1x64xf32> to vector<8x64xf32>
    %19 = arith.addf %16, %18 : vector<8x64xf32>
    %c1 = arith.constant 1 : index
    %c0_14 = arith.constant 0 : index
    %20 = vector.load %arg10[%c1, %c0_14] : memref<16x256xf32, #tpu.memory_space<vmem>>, vector<1x64xf32>
    %c2 = arith.constant 2 : index
    %c0_15 = arith.constant 0 : index
    %21 = vector.load %arg10[%c2, %c0_15] : memref<16x256xf32, #tpu.memory_space<vmem>>, vector<1x64xf32>
    %cst_16 = arith.constant dense<0.000000e+00> : vector<8xf32>
    %22 = vector.multi_reduction <add>, %19, %cst_16 [1] : vector<8x64xf32> to vector<8xf32>
    %23 = vector.shape_cast %22 : vector<8xf32> to vector<8x1xf32>
    %cst_17 = arith.constant 6.400000e+01 : f32
    %24 = vector.broadcast %cst_17 : f32 to vector<8x1xf32>
    %25 = arith.divf %23, %24 : vector<8x1xf32>
    %26 = arith.mulf %19, %19 : vector<8x64xf32>
    %cst_18 = arith.constant dense<0.000000e+00> : vector<8xf32>
    %27 = vector.multi_reduction <add>, %26, %cst_18 [1] : vector<8x64xf32> to vector<8xf32>
    %28 = vector.shape_cast %27 : vector<8xf32> to vector<8x1xf32>
    %cst_19 = arith.constant 6.400000e+01 : f32
    %29 = vector.broadcast %cst_19 : f32 to vector<8x1xf32>
    %30 = arith.divf %28, %29 : vector<8x1xf32>
    %31 = arith.mulf %25, %25 : vector<8x1xf32>
    %32 = arith.subf %30, %31 : vector<8x1xf32>
    %cst_20 = arith.constant 0.000000e+00 : f32
    %33 = vector.broadcast %cst_20 : f32 to vector<8x1xf32>
    %34 = arith.maximumf %32, %33 : vector<8x1xf32>
    %35 = vector.broadcast %25 : vector<8x1xf32> to vector<8x64xf32>
    %36 = arith.subf %19, %35 : vector<8x64xf32>
    %cst_21 = arith.constant 9.99999974E-6 : f32
    %37 = vector.broadcast %cst_21 : f32 to vector<8x1xf32>
    %38 = arith.addf %34, %37 : vector<8x1xf32>
    %39 = math.rsqrt %38 : vector<8x1xf32>
    %40 = vector.broadcast %39 : vector<8x1xf32> to vector<8x64xf32>
    %41 = arith.mulf %36, %40 : vector<8x64xf32>
    %42 = arith.truncf %41 : vector<8x64xf32> to vector<8x64xbf16>
    %43 = arith.truncf %20 : vector<1x64xf32> to vector<1x64xbf16>
    %44 = arith.truncf %21 : vector<1x64xf32> to vector<1x64xbf16>
    %45 = vector.broadcast %43 : vector<1x64xbf16> to vector<8x64xbf16>
    %46 = arith.mulf %42, %45 : vector<8x64xbf16>
    %47 = vector.broadcast %44 : vector<1x64xbf16> to vector<8x64xbf16>
    %48 = arith.addf %46, %47 : vector<8x64xbf16>
    %cst_22 = arith.constant 0.000000e+00 : bf16
    %49 = vector.broadcast %cst_22 : bf16 to vector<8x64xbf16>
    %50 = arith.maximumf %48, %49 : vector<8x64xbf16>
    %c0_23 = arith.constant 0 : index
    %c0_24 = arith.constant 0 : index
    %51 = vector.load %arg7[%c0_23, %c0_24] : memref<64x128xbf16, #tpu.memory_space<vmem>>, vector<64x128xbf16>
    %cst_25 = arith.constant dense<0.000000e+00> : vector<8x128xf32>
    %52 = tpu.matmul %50, %51, %cst_25 {dimension_numbers = #tpu.dot_dimension_numbers<[1], [0], [0], [1], [0, 0, 1, 1], [], []>} : vector<8x64xbf16>, vector<64x128xbf16>, vector<8x128xf32> -> vector<8x128xf32>
    %c3 = arith.constant 3 : index
    %c0_26 = arith.constant 0 : index
    %53 = vector.load %arg10[%c3, %c0_26] : memref<16x256xf32, #tpu.memory_space<vmem>>, vector<1x128xf32>
    %54 = vector.broadcast %53 : vector<1x128xf32> to vector<8x128xf32>
    %55 = arith.addf %52, %54 : vector<8x128xf32>
    %c4 = arith.constant 4 : index
    %c0_27 = arith.constant 0 : index
    %56 = vector.load %arg10[%c4, %c0_27] : memref<16x256xf32, #tpu.memory_space<vmem>>, vector<1x128xf32>
    %c5 = arith.constant 5 : index
    %c0_28 = arith.constant 0 : index
    %57 = vector.load %arg10[%c5, %c0_28] : memref<16x256xf32, #tpu.memory_space<vmem>>, vector<1x128xf32>
    %cst_29 = arith.constant dense<0.000000e+00> : vector<8xf32>
    %58 = vector.multi_reduction <add>, %55, %cst_29 [1] : vector<8x128xf32> to vector<8xf32>
    %59 = vector.shape_cast %58 : vector<8xf32> to vector<8x1xf32>
    %cst_30 = arith.constant 1.280000e+02 : f32
    %60 = vector.broadcast %cst_30 : f32 to vector<8x1xf32>
    %61 = arith.divf %59, %60 : vector<8x1xf32>
    %62 = arith.mulf %55, %55 : vector<8x128xf32>
    %cst_31 = arith.constant dense<0.000000e+00> : vector<8xf32>
    %63 = vector.multi_reduction <add>, %62, %cst_31 [1] : vector<8x128xf32> to vector<8xf32>
    %64 = vector.shape_cast %63 : vector<8xf32> to vector<8x1xf32>
    %cst_32 = arith.constant 1.280000e+02 : f32
    %65 = vector.broadcast %cst_32 : f32 to vector<8x1xf32>
    %66 = arith.divf %64, %65 : vector<8x1xf32>
    %67 = arith.mulf %61, %61 : vector<8x1xf32>
    %68 = arith.subf %66, %67 : vector<8x1xf32>
    %cst_33 = arith.constant 0.000000e+00 : f32
    %69 = vector.broadcast %cst_33 : f32 to vector<8x1xf32>
    %70 = arith.maximumf %68, %69 : vector<8x1xf32>
    %71 = vector.broadcast %61 : vector<8x1xf32> to vector<8x128xf32>
    %72 = arith.subf %55, %71 : vector<8x128xf32>
    %cst_34 = arith.constant 9.99999974E-6 : f32
    %73 = vector.broadcast %cst_34 : f32 to vector<8x1xf32>
    %74 = arith.addf %70, %73 : vector<8x1xf32>
    %75 = math.rsqrt %74 : vector<8x1xf32>
    %76 = vector.broadcast %75 : vector<8x1xf32> to vector<8x128xf32>
    %77 = arith.mulf %72, %76 : vector<8x128xf32>
    %78 = arith.truncf %77 : vector<8x128xf32> to vector<8x128xbf16>
    %79 = arith.truncf %56 : vector<1x128xf32> to vector<1x128xbf16>
    %80 = arith.truncf %57 : vector<1x128xf32> to vector<1x128xbf16>
    %81 = vector.broadcast %79 : vector<1x128xbf16> to vector<8x128xbf16>
    %82 = arith.mulf %78, %81 : vector<8x128xbf16>
    %83 = vector.broadcast %80 : vector<1x128xbf16> to vector<8x128xbf16>
    %84 = arith.addf %82, %83 : vector<8x128xbf16>
    %cst_35 = arith.constant 0.000000e+00 : bf16
    %85 = vector.broadcast %cst_35 : bf16 to vector<8x128xbf16>
    %86 = arith.maximumf %84, %85 : vector<8x128xbf16>
    %c0_36 = arith.constant 0 : index
    %c0_37 = arith.constant 0 : index
    %87 = vector.load %arg8[%c0_36, %c0_37] : memref<128x256xbf16, #tpu.memory_space<vmem>>, vector<128x256xbf16>
    %cst_38 = arith.constant dense<0.000000e+00> : vector<8x256xf32>
    %88 = tpu.matmul %86, %87, %cst_38 {dimension_numbers = #tpu.dot_dimension_numbers<[1], [0], [0], [1], [0, 0, 1, 1], [], []>} : vector<8x128xbf16>, vector<128x256xbf16>, vector<8x256xf32> -> vector<8x256xf32>
    %c6 = arith.constant 6 : index
    %c0_39 = arith.constant 0 : index
    %89 = vector.load %arg10[%c6, %c0_39] : memref<16x256xf32, #tpu.memory_space<vmem>>, vector<1x256xf32>
    %90 = vector.broadcast %89 : vector<1x256xf32> to vector<8x256xf32>
    %91 = arith.addf %88, %90 : vector<8x256xf32>
    %c7 = arith.constant 7 : index
    %c0_40 = arith.constant 0 : index
    %92 = vector.load %arg10[%c7, %c0_40] : memref<16x256xf32, #tpu.memory_space<vmem>>, vector<1x256xf32>
    %c8 = arith.constant 8 : index
    %c0_41 = arith.constant 0 : index
    %93 = vector.load %arg10[%c8, %c0_41] : memref<16x256xf32, #tpu.memory_space<vmem>>, vector<1x256xf32>
    %cst_42 = arith.constant dense<0.000000e+00> : vector<8xf32>
    %94 = vector.multi_reduction <add>, %91, %cst_42 [1] : vector<8x256xf32> to vector<8xf32>
    %95 = vector.shape_cast %94 : vector<8xf32> to vector<8x1xf32>
    %cst_43 = arith.constant 2.560000e+02 : f32
    %96 = vector.broadcast %cst_43 : f32 to vector<8x1xf32>
    %97 = arith.divf %95, %96 : vector<8x1xf32>
    %98 = arith.mulf %91, %91 : vector<8x256xf32>
    %cst_44 = arith.constant dense<0.000000e+00> : vector<8xf32>
    %99 = vector.multi_reduction <add>, %98, %cst_44 [1] : vector<8x256xf32> to vector<8xf32>
    %100 = vector.shape_cast %99 : vector<8xf32> to vector<8x1xf32>
    %cst_45 = arith.constant 2.560000e+02 : f32
    %101 = vector.broadcast %cst_45 : f32 to vector<8x1xf32>
    %102 = arith.divf %100, %101 : vector<8x1xf32>
    %103 = arith.mulf %97, %97 : vector<8x1xf32>
    %104 = arith.subf %102, %103 : vector<8x1xf32>
    %cst_46 = arith.constant 0.000000e+00 : f32
    %105 = vector.broadcast %cst_46 : f32 to vector<8x1xf32>
    %106 = arith.maximumf %104, %105 : vector<8x1xf32>
    %107 = vector.broadcast %97 : vector<8x1xf32> to vector<8x256xf32>
    %108 = arith.subf %91, %107 : vector<8x256xf32>
    %cst_47 = arith.constant 9.99999974E-6 : f32
    %109 = vector.broadcast %cst_47 : f32 to vector<8x1xf32>
    %110 = arith.addf %106, %109 : vector<8x1xf32>
    %111 = math.rsqrt %110 : vector<8x1xf32>
    %112 = vector.broadcast %111 : vector<8x1xf32> to vector<8x256xf32>
    %113 = arith.mulf %108, %112 : vector<8x256xf32>
    %114 = arith.truncf %113 : vector<8x256xf32> to vector<8x256xbf16>
    %115 = arith.truncf %92 : vector<1x256xf32> to vector<1x256xbf16>
    %116 = arith.truncf %93 : vector<1x256xf32> to vector<1x256xbf16>
    %117 = vector.broadcast %115 : vector<1x256xbf16> to vector<8x256xbf16>
    %118 = arith.mulf %114, %117 : vector<8x256xbf16>
    %119 = vector.broadcast %116 : vector<1x256xbf16> to vector<8x256xbf16>
    %120 = arith.addf %118, %119 : vector<8x256xbf16>
    %cst_48 = arith.constant 0.000000e+00 : bf16
    %121 = vector.broadcast %cst_48 : bf16 to vector<8x256xbf16>
    %122 = arith.maximumf %120, %121 : vector<8x256xbf16>
    %c0_49 = arith.constant 0 : index
    %c0_50 = arith.constant 0 : index
    %123 = vector.load %arg9[%c0_49, %c0_50] : memref<256x4xbf16, #tpu.memory_space<vmem>>, vector<256x4xbf16>
    %cst_51 = arith.constant dense<0.000000e+00> : vector<8x4xf32>
    %124 = tpu.matmul %122, %123, %cst_51 {dimension_numbers = #tpu.dot_dimension_numbers<[1], [0], [0], [1], [0, 0, 1, 1], [], []>} : vector<8x256xbf16>, vector<256x4xbf16>, vector<8x4xf32> -> vector<8x4xf32>
    %c9 = arith.constant 9 : index
    %c0_52 = arith.constant 0 : index
    %125 = vector.load %arg10[%c9, %c0_52] : memref<16x256xf32, #tpu.memory_space<vmem>>, vector<1x4xf32>
    %126 = vector.broadcast %125 : vector<1x4xf32> to vector<8x4xf32>
    %127 = arith.addf %124, %126 : vector<8x4xf32>
    %c10 = arith.constant 10 : index
    %c0_53 = arith.constant 0 : index
    %128 = vector.load %arg10[%c10, %c0_53] : memref<16x256xf32, #tpu.memory_space<vmem>>, vector<1x4xf32>
    %c11 = arith.constant 11 : index
    %c0_54 = arith.constant 0 : index
    %129 = vector.load %arg10[%c11, %c0_54] : memref<16x256xf32, #tpu.memory_space<vmem>>, vector<1x4xf32>
    %cst_55 = arith.constant dense<0.000000e+00> : vector<8xf32>
    %130 = vector.multi_reduction <add>, %127, %cst_55 [1] : vector<8x4xf32> to vector<8xf32>
    %131 = vector.shape_cast %130 : vector<8xf32> to vector<8x1xf32>
    %cst_56 = arith.constant 4.000000e+00 : f32
    %132 = vector.broadcast %cst_56 : f32 to vector<8x1xf32>
    %133 = arith.divf %131, %132 : vector<8x1xf32>
    %134 = vector.broadcast %133 : vector<8x1xf32> to vector<8x4xf32>
    %135 = arith.subf %127, %134 : vector<8x4xf32>
    %136 = arith.mulf %135, %135 : vector<8x4xf32>
    %cst_57 = arith.constant dense<0.000000e+00> : vector<8xf32>
    %137 = vector.multi_reduction <add>, %136, %cst_57 [1] : vector<8x4xf32> to vector<8xf32>
    %138 = vector.shape_cast %137 : vector<8xf32> to vector<8x1xf32>
    %cst_58 = arith.constant 4.000000e+00 : f32
    %139 = vector.broadcast %cst_58 : f32 to vector<8x1xf32>
    %140 = arith.divf %138, %139 : vector<8x1xf32>
    %cst_59 = arith.constant 9.99999974E-6 : f32
    %141 = vector.broadcast %cst_59 : f32 to vector<8x1xf32>
    %142 = arith.addf %140, %141 : vector<8x1xf32>
    %143 = math.rsqrt %142 : vector<8x1xf32>
    %144 = vector.broadcast %143 : vector<8x1xf32> to vector<8x4xf32>
    %145 = arith.mulf %135, %144 : vector<8x4xf32>
    %146 = vector.broadcast %128 : vector<1x4xf32> to vector<8x4xf32>
    %147 = arith.mulf %145, %146 : vector<8x4xf32>
    %148 = vector.broadcast %129 : vector<1x4xf32> to vector<8x4xf32>
    %149 = arith.addf %147, %148 : vector<8x4xf32>
    %c0_60 = arith.constant 0 : index
    %c0_61 = arith.constant 0 : index
    %150 = vector.load %arg4[%c0_60, %c0_61] : memref<8x4xf32, #tpu.memory_space<vmem>>, vector<8x4xf32>
    %151 = vector.shape_cast %2 : vector<8x1xi1> to vector<8x1xi1>
    %152 = vector.broadcast %151 : vector<8x1xi1> to vector<8x4xi1>
    %153 = arith.select %152, %150, %149 : vector<8x4xi1>, vector<8x4xf32>
    %c0_62 = arith.constant 0 : index
    %c0_63 = arith.constant 0 : index
    %154 = vector.load %arg11[%c0_62, %c0_63] : memref<8x4xf32, #tpu.memory_space<vmem>>, vector<8x4xf32>
    tpu.vector_store %arg11[%c0_62, %c0_63], %153 {strides = array<i32>} : memref<8x4xf32, #tpu.memory_space<vmem>>, vector<8x4xf32>,
    return
  }
  func.func @transform_0(%arg0: i32) -> (i32, i32) {
    %c0_i32 = arith.constant 0 : i32
    %c0_i32_0 = arith.constant 0 : i32
    return %arg0, %c0_i32 : i32, i32
  }
  func.func @transform_1(%arg0: i32) -> (i32, i32) {
    %c0_i32 = arith.constant 0 : i32
    %c0_i32_0 = arith.constant 0 : i32
    return %arg0, %c0_i32 : i32, i32
  }
  func.func @transform_2(%arg0: i32) -> (i32, i32) {
    %c0_i32 = arith.constant 0 : i32
    %c0_i32_0 = arith.constant 0 : i32
    return %arg0, %c0_i32 : i32, i32
  }
  func.func @transform_3(%arg0: i32) -> (i32, i32) {
    %c0_i32 = arith.constant 0 : i32
    %c0_i32_0 = arith.constant 0 : i32
    return %arg0, %c0_i32 : i32, i32
  }
  func.func @transform_4(%arg0: i32) -> (i32, i32) {
    %c0_i32 = arith.constant 0 : i32
    %c0_i32_0 = arith.constant 0 : i32
    %c0_i32_1 = arith.constant 0 : i32
    return %c0_i32, %c0_i32_0 : i32, i32
  }
  func.func @transform_5(%arg0: i32) -> (i32, i32) {
    %c0_i32 = arith.constant 0 : i32
    %c0_i32_0 = arith.constant 0 : i32
    %c0_i32_1 = arith.constant 0 : i32
    return %c0_i32, %c0_i32_0 : i32, i32
  }
  func.func @transform_6(%arg0: i32) -> (i32, i32) {
    %c0_i32 = arith.constant 0 : i32
    %c0_i32_0 = arith.constant 0 : i32
    %c0_i32_1 = arith.constant 0 : i32
    return %c0_i32, %c0_i32_0 : i32, i32
  }
  func.func @transform_7(%arg0: i32) -> (i32, i32) {
    %c0_i32 = arith.constant 0 : i32
    %c0_i32_0 = arith.constant 0 : i32
    %c0_i32_1 = arith.constant 0 : i32
    return %c0_i32, %c0_i32_0 : i32, i32
  }
  func.func @transform_8(%arg0: i32) -> (i32, i32) {
    %c0_i32 = arith.constant 0 : i32
    %c0_i32_0 = arith.constant 0 : i32
    %c0_i32_1 = arith.constant 0 : i32
    return %c0_i32, %c0_i32_0 : i32, i32
  }
  func.func @transform_9(%arg0: i32) -> (i32, i32) {
    %c0_i32 = arith.constant 0 : i32
    %c0_i32_0 = arith.constant 0 : i32
    %c0_i32_1 = arith.constant 0 : i32
    return %c0_i32, %c0_i32_0 : i32, i32
  }
  func.func @transform_10(%arg0: i32) -> (i32, i32) {
    %c0_i32 = arith.constant 0 : i32
    %c0_i32_0 = arith.constant 0 : i32
    return %arg0, %c0_i32 : i32, i32
  }
}

</mosaic_0001>

<llo_original>
// kernel: pointcloud_encoder.1
$region0: #{pointcloud_encoder.1}
  #allocation0 [shape = 'u32[]', space=smem, size = 0x4, offset = 0x4, fixed_abs, tag = 'smem constant byte address 0x4 - core index']
  #allocation1 [shape = 'u32[72,128]{1,0:T(1,128)}', space=vmem, size = 0x9000, scoped, tag = 'internal scratch']
  %s0 = inlined_call_operand.vmem [shape: f32[32,12], index: 0, kind: input, shape index: {}]
  %s1 = inlined_call_operand.vmem [shape: f32[32,3], index: 1, kind: input, shape index: {}]
  %s2 = inlined_call_operand.vmem [shape: f32[32,1], index: 2, kind: input, shape index: {}]
  %s3 = inlined_call_operand.vmem [shape: f32[32,4], index: 3, kind: input, shape index: {}]
  %s4 = inlined_call_operand.vmem [shape: bf16[12,64], index: 4, kind: input, shape index: {}]
  %s5 = inlined_call_operand.vmem [shape: bf16[3,64], index: 5, kind: input, shape index: {}]
  %s6 = inlined_call_operand.vmem [shape: bf16[64,128], index: 6, kind: input, shape index: {}]
  %s7 = inlined_call_operand.vmem [shape: bf16[128,256], index: 7, kind: input, shape index: {}]
  %s8 = inlined_call_operand.vmem [shape: bf16[256,4], index: 8, kind: input, shape index: {}]
  %s9 = inlined_call_operand.vmem [shape: f32[16,256], index: 9, kind: input, shape index: {}]
  %s10 = inlined_call_operand.vmem [shape: f32[32,4], index: 10, kind: output, shape index: {}]
  %s11 = sld [smem:[#allocation0]]
  $region73: #{pointcloud_encoder.1} parent=0
    _
  %s13 = ssub.s32 1, %s11
  %s14 = scalar_select 0, %s13, %s11
  loop: start=0, step=1, limit=6
  $region2: #{pointcloud_encoder.1} parent=0 // loop_pre_header
    _
  $region3: #{pointcloud_encoder.1} parent=0 // loop_header
    %s16 = sphi 0, %s20
    %p17 = scmp.ge.s32.totalorder %s16, 6
    %s26 = sphi 0, %s28
    %s29 = sphi 0, %s26
    %s30 = sphi 0, %s29
    %s46 = sphi 0, %s30
    %s52 = sphi 0, %s54
    %s55 = sphi 0, %s52
    %s56 = sphi 0, %s55
    %s72 = sphi 0, %s56
    %s78 = sphi 0, %s80
    %s81 = sphi 0, %s78
    %s82 = sphi 0, %s81
    %s98 = sphi 0, %s82
    %s104 = sphi 0, %s106
    %s107 = sphi 0, %s104
    %s108 = sphi 0, %s107
    %s124 = sphi 0, %s108
    %s128 = sphi 0, %s128
    %s130 = sphi 0, %s128
    %s131 = sphi 0, %s130
    %s145 = sphi 0, %s131
    %s149 = sphi 0, %s149
    %s151 = sphi 0, %s149
    %s152 = sphi 0, %s151
    %s166 = sphi 0, %s152
    %s170 = sphi 0, %s170
    %s172 = sphi 0, %s170
    %s173 = sphi 0, %s172
    %s187 = sphi 0, %s173
    %s191 = sphi 0, %s191
    %s193 = sphi 0, %s191
    %s194 = sphi 0, %s193
    %s208 = sphi 0, %s194
    %s212 = sphi 0, %s212
    %s214 = sphi 0, %s212
    %s215 = sphi 0, %s214
    %s229 = sphi 0, %s215
    %s233 = sphi 0, %s233
    %s235 = sphi 0, %s233
    %s236 = sphi 0, %s235
    %s250 = sphi 0, %s236
    %s256 = sphi 0, %s258
    %s259 = sphi 0, %s256
    %s260 = sphi 0, %s259
    %s276 = sphi 0, %s260
  $region4: #{pointcloud_encoder.1} parent=0 // loop_header_branch
    %19 = sbr.rel (%p17) target = $region8
  $region5: #{pointcloud_encoder.1} parent=0 // loop_body
    %s21 = ssub.s32 %s16, 1
    %s22 = ssub.s32 %s16, 2
    %s23 = sadd.s32 %s16, 1
    %s24 = ssub.s32 %s16, %s23
    %p25 = scmp.eq.s32.totalorder %s24, 0
    %s27 = sadd.s32 %s26, 1
    %s28 = scalar_select %p25, %s26, %s27
    %p31 = pneg %p25
    %p32 = scmp.eq.s32.totalorder %s16, 3
    %p33 = por %p31, %p32
    %p34 = scmp.ne.s32.totalorder %s26, %s29
    %p35 = scmp.eq.s32.totalorder %s16, 0
    %p36 = por %p34, %p35
    %p37 = scmp.ne.s32.totalorder %s26, %s29
    %p38 = scmp.eq.s32.totalorder %s21, 3
    %p39 = por %p37, %p38
    %p40 = scmp.ne.s32.totalorder %s29, %s30
    %p41 = scmp.eq.s32.totalorder %s21, 0
    %p42 = por %p40, %p41
    %p43 = scmp.ne.s32.totalorder %s29, %s30
    %p44 = scmp.eq.s32.totalorder %s22, 3
    %p45 = por %p43, %p44
    %p47 = scmp.ne.s32.totalorder %s30, %s46
    %p48 = scmp.eq.s32.totalorder %s22, 0
    %p49 = por %p47, %p48
    %s50 = ssub.s32 %s16, %s23
    %p51 = scmp.eq.s32.totalorder %s50, 0
    %s53 = sadd.s32 %s52, 1
    %s54 = scalar_select %p51, %s52, %s53
    %p57 = pneg %p51
    %p58 = scmp.eq.s32.totalorder %s16, 3
    %p59 = por %p57, %p58
    %p60 = scmp.ne.s32.totalorder %s52, %s55
    %p61 = scmp.eq.s32.totalorder %s16, 0
    %p62 = por %p60, %p61
    %p63 = scmp.ne.s32.totalorder %s52, %s55
    %p64 = scmp.eq.s32.totalorder %s21, 3
    %p65 = por %p63, %p64
    %p66 = scmp.ne.s32.totalorder %s55, %s56
    %p67 = scmp.eq.s32.totalorder %s21, 0
    %p68 = por %p66, %p67
    %p69 = scmp.ne.s32.totalorder %s55, %s56
    %p70 = scmp.eq.s32.totalorder %s22, 3
    %p71 = por %p69, %p70
    %p73 = scmp.ne.s32.totalorder %s56, %s72
    %p74 = scmp.eq.s32.totalorder %s22, 0
    %p75 = por %p73, %p74
    %s76 = ssub.s32 %s16, %s23
    %p77 = scmp.eq.s32.totalorder %s76, 0
    %s79 = sadd.s32 %s78, 1
    %s80 = scalar_select %p77, %s78, %s79
    %p83 = pneg %p77
    %p84 = scmp.eq.s32.totalorder %s16, 3
    %p85 = por %p83, %p84
    %p86 = scmp.ne.s32.totalorder %s78, %s81
    %p87 = scmp.eq.s32.totalorder %s16, 0
    %p88 = por %p86, %p87
    %p89 = scmp.ne.s32.totalorder %s78, %s81
    %p90 = scmp.eq.s32.totalorder %s21, 3
    %p91 = por %p89, %p90
    %p92 = scmp.ne.s32.totalorder %s81, %s82
    %p93 = scmp.eq.s32.totalorder %s21, 0
    %p94 = por %p92, %p93
    %p95 = scmp.ne.s32.totalorder %s81, %s82
    %p96 = scmp.eq.s32.totalorder %s22, 3
    %p97 = por %p95, %p96
    %p99 = scmp.ne.s32.totalorder %s82, %s98
    %p100 = scmp.eq.s32.totalorder %s22, 0
    %p101 = por %p99, %p100
    %s102 = ssub.s32 %s16, %s23
    %p103 = scmp.eq.s32.totalorder %s102, 0
    %s105 = sadd.s32 %s104, 1
    %s106 = scalar_select %p103, %s104, %s105
    %p109 = pneg %p103
    %p110 = scmp.eq.s32.totalorder %s16, 3
    %p111 = por %p109, %p110
    %p112 = scmp.ne.s32.totalorder %s104, %s107
    %p113 = scmp.eq.s32.totalorder %s16, 0
    %p114 = por %p112, %p113
    %p115 = scmp.ne.s32.totalorder %s104, %s107
    %p116 = scmp.eq.s32.totalorder %s21, 3
    %p117 = por %p115, %p116
    %p118 = scmp.ne.s32.totalorder %s107, %s108
    %p119 = scmp.eq.s32.totalorder %s21, 0
    %p120 = por %p118, %p119
    %p121 = scmp.ne.s32.totalorder %s107, %s108
    %p122 = scmp.eq.s32.totalorder %s22, 3
    %p123 = por %p121, %p122
    %p125 = scmp.ne.s32.totalorder %s108, %s124
    %p126 = scmp.eq.s32.totalorder %s22, 0
    %p127 = por %p125, %p126
    %s129 = sadd.s32 %s128, 1
    %p132 = scmp.eq.s32.totalorder %s16, 3
    %p133 = scmp.ne.s32.totalorder %s128, %s130
    %p134 = scmp.eq.s32.totalorder %s16, 0
    %p135 = por %p133, %p134
    %p136 = scmp.ne.s32.totalorder %s128, %s130
    %p137 = scmp.eq.s32.totalorder %s21, 3
    %p138 = por %p136, %p137
    %p139 = scmp.ne.s32.totalorder %s130, %s131
    %p140 = scmp.eq.s32.totalorder %s21, 0
    %p141 = por %p139, %p140
    %p142 = scmp.ne.s32.totalorder %s130, %s131
    %p143 = scmp.eq.s32.totalorder %s22, 3
    %p144 = por %p142, %p143
    %p146 = scmp.ne.s32.totalorder %s131, %s145
    %p147 = scmp.eq.s32.totalorder %s22, 0
    %p148 = por %p146, %p147
    %s150 = sadd.s32 %s149, 1
    %p153 = scmp.eq.s32.totalorder %s16, 3
    %p154 = scmp.ne.s32.totalorder %s149, %s151
    %p155 = scmp.eq.s32.totalorder %s16, 0
    %p156 = por %p154, %p155
    %p157 = scmp.ne.s32.totalorder %s149, %s151
    %p158 = scmp.eq.s32.totalorder %s21, 3
    %p159 = por %p157, %p158
    %p160 = scmp.ne.s32.totalorder %s151, %s152
    %p161 = scmp.eq.s32.totalorder %s21, 0
    %p162 = por %p160, %p161
    %p163 = scmp.ne.s32.totalorder %s151, %s152
    %p164 = scmp.eq.s32.totalorder %s22, 3
    %p165 = por %p163, %p164
    %p167 = scmp.ne.s32.totalorder %s152, %s166
    %p168 = scmp.eq.s32.totalorder %s22, 0
    %p169 = por %p167, %p168
    %s171 = sadd.s32 %s170, 1
    %p174 = scmp.eq.s32.totalorder %s16, 3
    %p175 = scmp.ne.s32.totalorder %s170, %s172
    %p176 = scmp.eq.s32.totalorder %s16, 0
    %p177 = por %p175, %p176
    %p178 = scmp.ne.s32.totalorder %s170, %s172
    %p179 = scmp.eq.s32.totalorder %s21, 3
    %p180 = por %p178, %p179
    %p181 = scmp.ne.s32.totalorder %s172, %s173
    %p182 = scmp.eq.s32.totalorder %s21, 0
    %p183 = por %p181, %p182
    %p184 = scmp.ne.s32.totalorder %s172, %s173
    %p185 = scmp.eq.s32.totalorder %s22, 3
    %p186 = por %p184, %p185
    %p188 = scmp.ne.s32.totalorder %s173, %s187
    %p189 = scmp.eq.s32.totalorder %s22, 0
    %p190 = por %p188, %p189
    %s192 = sadd.s32 %s191, 1
    %p195 = scmp.eq.s32.totalorder %s16, 3
    %p196 = scmp.ne.s32.totalorder %s191, %s193
    %p197 = scmp.eq.s32.totalorder %s16, 0
    %p198 = por %p196, %p197
    %p199 = scmp.ne.s32.totalorder %s191, %s193
    %p200 = scmp.eq.s32.totalorder %s21, 3
    %p201 = por %p199, %p200
    %p202 = scmp.ne.s32.totalorder %s193, %s194
    %p203 = scmp.eq.s32.totalorder %s21, 0
    %p204 = por %p202, %p203
    %p205 = scmp.ne.s32.totalorder %s193, %s194
    %p206 = scmp.eq.s32.totalorder %s22, 3
    %p207 = por %p205, %p206
    %p209 = scmp.ne.s32.totalorder %s194, %s208
    %p210 = scmp.eq.s32.totalorder %s22, 0
    %p211 = por %p209, %p210
    %s213 = sadd.s32 %s212, 1
    %p216 = scmp.eq.s32.totalorder %s16, 3
    %p217 = scmp.ne.s32.totalorder %s212, %s214
    %p218 = scmp.eq.s32.totalorder %s16, 0
    %p219 = por %p217, %p218
    %p220 = scmp.ne.s32.totalorder %s212, %s214
    %p221 = scmp.eq.s32.totalorder %s21, 3
    %p222 = por %p220, %p221
    %p223 = scmp.ne.s32.totalorder %s214, %s215
    %p224 = scmp.eq.s32.totalorder %s21, 0
    %p225 = por %p223, %p224
    %p226 = scmp.ne.s32.totalorder %s214, %s215
    %p227 = scmp.eq.s32.totalorder %s22, 3
    %p228 = por %p226, %p227
    %p230 = scmp.ne.s32.totalorder %s215, %s229
    %p231 = scmp.eq.s32.totalorder %s22, 0
    %p232 = por %p230, %p231
    %s234 = sadd.s32 %s233, 1
    %p237 = scmp.eq.s32.totalorder %s16, 3
    %p238 = scmp.ne.s32.totalorder %s233, %s235
    %p239 = scmp.eq.s32.totalorder %s16, 0
    %p240 = por %p238, %p239
    %p241 = scmp.ne.s32.totalorder %s233, %s235
    %p242 = scmp.eq.s32.totalorder %s21, 3
    %p243 = por %p241, %p242
    %p244 = scmp.ne.s32.totalorder %s235, %s236
    %p245 = scmp.eq.s32.totalorder %s21, 0
    %p246 = por %p244, %p245
    %p247 = scmp.ne.s32.totalorder %s235, %s236
    %p248 = scmp.eq.s32.totalorder %s22, 3
    %p249 = por %p247, %p248
    %p251 = scmp.ne.s32.totalorder %s236, %s250
    %p252 = scmp.eq.s32.totalorder %s22, 0
    %p253 = por %p251, %p252
    %s254 = ssub.s32 %s16, %s23
    %p255 = scmp.eq.s32.totalorder %s254, 0
    %s257 = sadd.s32 %s256, 1
    %s258 = scalar_select %p255, %s256, %s257
    %p261 = pneg %p255
    %p262 = scmp.eq.s32.totalorder %s16, 3
    %p263 = por %p261, %p262
    %p264 = scmp.ne.s32.totalorder %s256, %s259
    %p265 = scmp.eq.s32.totalorder %s16, 0
    %p266 = por %p264, %p265
    %p267 = scmp.ne.s32.totalorder %s256, %s259
    %p268 = scmp.eq.s32.totalorder %s21, 3
    %p269 = por %p267, %p268
    %p270 = scmp.ne.s32.totalorder %s259, %s260
    %p271 = scmp.eq.s32.totalorder %s21, 0
    %p272 = por %p270, %p271
    %p273 = scmp.ne.s32.totalorder %s259, %s260
    %p274 = scmp.eq.s32.totalorder %s22, 3
    %p275 = por %p273, %p274
    %p277 = scmp.ne.s32.totalorder %s260, %s276
    %p278 = scmp.eq.s32.totalorder %s22, 0
    %p279 = por %p277, %p278
    %p280 = scmp.le.s32.totalorder 1, %s16
    %p281 = scmp.lt.s32.totalorder %s16, 5
    %p282 = pnand %p280, %p281
    %p283 = pneg %p282
    // Predicated region
    $region9: #{pointcloud_encoder.1} parent=5 // pred_check
      _
    $region10: #{pointcloud_encoder.1} parent=5 // pred_check_branch
      %285 = sbr.rel (%p282) target = $region12
    $region11: #{pointcloud_encoder.1} parent=5 // pred_region
      %s286 = ssub.s32 %s16, 1
      // Predicated region
      $region13: #{pointcloud_encoder.1} parent=11 // pred_check
        %p287 = pneg %p141
      $region14: #{pointcloud_encoder.1} parent=11 // pred_check_branch
        %289 = sbr.rel (%p287) target = $region16
      $region15: #{pointcloud_encoder.1} parent=11 // pred_region
        _
      $region16: #{pointcloud_encoder.1} parent=11 // pred_fallthru
        _
      // Predicated region
      $region17: #{pointcloud_encoder.1} parent=11 // pred_check
        %p290 = pneg %p162
      $region18: #{pointcloud_encoder.1} parent=11 // pred_check_branch
        %292 = sbr.rel (%p290) target = $region20
      $region19: #{pointcloud_encoder.1} parent=11 // pred_region
        _
      $region20: #{pointcloud_encoder.1} parent=11 // pred_fallthru
        _
      // Predicated region
      $region21: #{pointcloud_encoder.1} parent=11 // pred_check
        %p293 = pneg %p183
      $region22: #{pointcloud_encoder.1} parent=11 // pred_check_branch
        %295 = sbr.rel (%p293) target = $region24
      $region23: #{pointcloud_encoder.1} parent=11 // pred_region
        _
      $region24: #{pointcloud_encoder.1} parent=11 // pred_fallthru
        _
      // Predicated region
      $region25: #{pointcloud_encoder.1} parent=11 // pred_check
        %p296 = pneg %p204
      $region26: #{pointcloud_encoder.1} parent=11 // pred_check_branch
        %298 = sbr.rel (%p296) target = $region28
      $region27: #{pointcloud_encoder.1} parent=11 // pred_region
        _
      $region28: #{pointcloud_encoder.1} parent=11 // pred_fallthru
        _
      // Predicated region
      $region29: #{pointcloud_encoder.1} parent=11 // pred_check
        %p299 = pneg %p225
      $region30: #{pointcloud_encoder.1} parent=11 // pred_check_branch
        %301 = sbr.rel (%p299) target = $region32
      $region31: #{pointcloud_encoder.1} parent=11 // pred_region
        _
      $region32: #{pointcloud_encoder.1} parent=11 // pred_fallthru
        _
      // Predicated region
      $region33: #{pointcloud_encoder.1} parent=11 // pred_check
        %p302 = pneg %p246
      $region34: #{pointcloud_encoder.1} parent=11 // pred_check_branch
        %304 = sbr.rel (%p302) target = $region36
      $region35: #{pointcloud_encoder.1} parent=11 // pred_region
        _
      $region36: #{pointcloud_encoder.1} parent=11 // pred_fallthru
        _
    $region12: #{pointcloud_encoder.1} parent=5 // pred_fallthru
      _
    %p305 = scmp.lt.s32.totalorder %s16, 4
    // Predicated region
    $region37: #{pointcloud_encoder.1} parent=5 // pred_check
      %p306 = pneg %p305
    $region38: #{pointcloud_encoder.1} parent=5 // pred_check_branch
      %308 = sbr.rel (%p306) target = $region40
    $region39: #{pointcloud_encoder.1} parent=5 // pred_region
      // Predicated region
      $region41: #{pointcloud_encoder.1} parent=39 // pred_check
        %p309 = pneg %p36
      $region42: #{pointcloud_encoder.1} parent=39 // pred_check_branch
        %311 = sbr.rel (%p309) target = $region44
      $region43: #{pointcloud_encoder.1} parent=39 // pred_region
        %p312 = scmp.lt.s32.totalorder %s16, 3
        %s313 = scalar_select %p312, %s16, 3
        %s314 = smul.addr %s313, 8
        %s315 = scalar_lea.vmem %s0, %s314
      $region44: #{pointcloud_encoder.1} parent=39 // pred_fallthru
        _
      // Predicated region
      $region45: #{pointcloud_encoder.1} parent=39 // pred_check
        %p316 = pneg %p62
      $region46: #{pointcloud_encoder.1} parent=39 // pred_check_branch
        %318 = sbr.rel (%p316) target = $region48
      $region47: #{pointcloud_encoder.1} parent=39 // pred_region
        %p319 = scmp.lt.s32.totalorder %s16, 3
        %s320 = scalar_select %p319, %s16, 3
        %s321 = smul.addr %s320, 8
        %s322 = scalar_lea.vmem %s1, %s321
      $region48: #{pointcloud_encoder.1} parent=39 // pred_fallthru
        _
      // Predicated region
      $region49: #{pointcloud_encoder.1} parent=39 // pred_check
        %p323 = pneg %p88
      $region50: #{pointcloud_encoder.1} parent=39 // pred_check_branch
        %325 = sbr.rel (%p323) target = $region52
      $region51: #{pointcloud_encoder.1} parent=39 // pred_region
        %p326 = scmp.lt.s32.totalorder %s16, 3
        %s327 = scalar_select %p326, %s16, 3
        %s328 = smul.addr %s327, 8
        %s329 = scalar_lea.vmem %s2, %s328
      $region52: #{pointcloud_encoder.1} parent=39 // pred_fallthru
        _
      // Predicated region
      $region53: #{pointcloud_encoder.1} parent=39 // pred_check
        %p330 = pneg %p114
      $region54: #{pointcloud_encoder.1} parent=39 // pred_check_branch
        %332 = sbr.rel (%p330) target = $region56
      $region55: #{pointcloud_encoder.1} parent=39 // pred_region
        %p333 = scmp.lt.s32.totalorder %s16, 3
        %s334 = scalar_select %p333, %s16, 3
        %s335 = smul.addr %s334, 8
        %s336 = scalar_lea.vmem %s3, %s335
      $region56: #{pointcloud_encoder.1} parent=39 // pred_fallthru
        _
    $region40: #{pointcloud_encoder.1} parent=5 // pred_fallthru
      _
    %p337 = scmp.le.s32.totalorder 1, %s16
    %p338 = scmp.lt.s32.totalorder %s16, 5
    %p339 = pnand %p337, %p338
    %p340 = pneg %p339
    // Predicated region
    $region57: #{pointcloud_encoder.1} parent=5 // pred_check
      _
    $region58: #{pointcloud_encoder.1} parent=5 // pred_check_branch
      %342 = sbr.rel (%p339) target = $region60
    $region59: #{pointcloud_encoder.1} parent=5 // pred_region
      %s343 = ssub.s32 %s16, 1
      %p344 = scmp.lt.s32.totalorder %s21, 3
      %s345 = scalar_select %p344, %s21, 3
      %s346 = smul.addr %s345, 8
      %s347 = scalar_lea.vmem %s0, %s346
      %p348 = pneg %p42
      %p349 = pneg %p39
      %p350 = scmp.lt.s32.totalorder %s21, 3
      %s351 = scalar_select %p350, %s21, 3
      %s352 = smul.addr %s351, 8
      %s353 = scalar_lea.vmem %s1, %s352
      %p354 = pneg %p68
      %p355 = pneg %p65
      %p356 = scmp.lt.s32.totalorder %s21, 3
      %s357 = scalar_select %p356, %s21, 3
      %s358 = smul.addr %s357, 8
      %s359 = scalar_lea.vmem %s2, %s358
      %p360 = pneg %p94
      %p361 = pneg %p91
      %p362 = scmp.lt.s32.totalorder %s21, 3
      %s363 = scalar_select %p362, %s21, 3
      %s364 = smul.addr %s363, 8
      %s365 = scalar_lea.vmem %s3, %s364
      %p366 = pneg %p120
      %p367 = pneg %p117
      %p368 = pneg %p141
      %p369 = pneg %p138
      %p370 = pneg %p162
      %p371 = pneg %p159
      %p372 = pneg %p183
      %p373 = pneg %p180
      %p374 = pneg %p204
      %p375 = pneg %p201
      %p376 = pneg %p225
      %p377 = pneg %p222
      %p378 = pneg %p246
      %p379 = pneg %p243
      %p380 = pneg %p272
      %p381 = pneg %p269
      %p382 = scmp.lt.s32.totalorder %s21, 3
      %s383 = scalar_select %p382, %s21, 3
      %s384 = smul.addr %s383, 8
      %s385 = scalar_lea.vmem %s10, %s384
      %p386 = scmp.lt.s32.totalorder %s21, 3
      %s387 = scalar_select %p386, %s21, 3
      %s388 = smul.addr %s387, 8
      %s389 = scalar_lea.vmem %s0, %s388
      %p390 = scmp.lt.s32.totalorder %s21, 3
      %s391 = scalar_select %p390, %s21, 3
      %s392 = smul.addr %s391, 8
      %s393 = scalar_lea.vmem %s1, %s392
      %p394 = scmp.lt.s32.totalorder %s21, 3
      %s395 = scalar_select %p394, %s21, 3
      %s396 = smul.addr %s395, 8
      %s397 = scalar_lea.vmem %s2, %s396
      %p398 = scmp.lt.s32.totalorder %s21, 3
      %s399 = scalar_select %p398, %s21, 3
      %s400 = smul.addr %s399, 8
      %s401 = scalar_lea.vmem %s3, %s400
      %p402 = scmp.lt.s32.totalorder %s21, 3
      %s403 = scalar_select %p402, %s21, 3
      %s404 = smul.addr %s403, 8
      %s405 = scalar_lea.vmem %s10, %s404
      %v407 = vld [vmem:[%s397] sm:$0xff]
      %vm408 = vcmp.eq.f32.partialorder %v407, 1.0
      %v409 = vld [vmem:[%s389] sm:$0xff]
      %v410 = vpack.c.bf16 %v409, %v409
      %v411 = vld [vmem:[%s4] sm:$0xf]
      %v412 = vld [vmem:[%s4 + $0x4] sm:$0x3]
      %v413 = vld [vmem:[%s393] sm:$0xff]
      %v414 = vpack.c.bf16 %v413, %v413
      %v415 = vld [vmem:[%s5] sm:$0x3]
      %vm416 = vcmask 23552
      %v418 = vsel %vm416, %v414, 0
      %vm420 = vcmask 1040384
      %vm421 = vcmask 1041408
      %v422 = vsel %vm420, 4294967295, 65535
      %v423 = vsel %vm421, %v422, 0
      %v425 = vand.u32 %v415, %v423
      %427 = vmatpush.bf16.msra.mxu0 0
      %428 = vmatpush.bf16.msra.mxu0 0
      %429 = vmatpush.bf16.msra.mxu0 0
      %430 = vmatpush.bf16.msra.mxu0 0
      %431 = vmatpush.bf16.msra.mxu0 0
      %432 = vmatpush.bf16.msra.mxu0 0
      %433 = vmatpush.bf16.msra.mxu0 0
      %434 = vmatpush.bf16.msra.mxu0 %v425
      %435 = vmatmul.bf16.gmra.mxu0 %v418
      %v436 = vpop.f32.mrf.mxu0
      %v437 = vadd.f32 0.0, %v436
      %v438 = vpop.f32.mrf.mxu0
      %439 = vdwg.mxu0
      %v442 = vunpack.c.l.b16 %v411
      %v443 = vunpack.c.l.b16 %v412
      %v444 = vpack.c.b16 %v443, %v442
      %vm445 = vcmask 97280
      %v447 = vsel %vm445, %v410, 0
      %vm449 = vcmask 1045504
      %v451 = vsel %vm449, %v444, 0
      %453 = vmatpush.bf16.msra.mxu0 0
      %454 = vmatpush.bf16.msra.mxu0 0
      %455 = vmatpush.bf16.msra.mxu0 0
      %456 = vmatpush.bf16.msra.mxu0 0
      %457 = vmatpush.bf16.msra.mxu0 0
      %458 = vmatpush.bf16.msra.mxu0 0
      %459 = vmatpush.bf16.msra.mxu0 0
      %460 = vmatpush.bf16.msra.mxu0 %v451
      %461 = vmatmul.bf16.gmra.mxu0 %v447
      %v462 = vpop.f32.mrf.mxu0
      %v463 = vadd.f32 %v437, %v462
      %v464 = vpop.f32.mrf.mxu0
      %465 = vdwg.mxu0
      %v466 = vld [vmem:[%s9 + $0x14] ss:$0 sm:$0xff]
      %468 = vset.pattern.permute.xlu0 0
      %469 = vperm.xlu0 %468, %v407
      %v470 = vpop.permute.xlu0 %469
      %v472 = vmul.f32 %v470, %v466
      %v473 = vadd.f32 %v463, %v472
      %v474 = vld [vmem:[%s9] ss:$0 sm:$0xff]
      %v475 = vadd.f32 %v473, %v474
      %v476 = vld [vmem:[%s9 + $0x1] ss:$0 sm:$0xff]
      %v477 = vld [vmem:[%s9 + $0x2] ss:$0 sm:$0xff]
      %vm478 = vcmask 523264
      %v479 = vsel %vm478, %v475, 0.0
      %480 = vadd.xlane.f32.xlu0 %v479
      %v481 = vpop.xlane.xlu0 %480
      %v482 = vrcp.pop 64.0
      %v483 = vmul.f32 64.0, %v482
      %v484 = vsub.f32 1.0, %v483
      %v485 = vmul.f32 %v482, %v484
      %v486 = vadd.f32 %v482, %v485
      %vm487 = vweird.f32 %v482
      %v488 = vsel %vm487, %v482, %v486
      %v489 = vmul.f32 %v481, %v488
      %v490 = vmul.f32 %v475, %v475
      %v491 = vsel %vm478, %v490, 0.0
      %492 = vadd.xlane.f32.xlu0 %v491
      %v493 = vpop.xlane.xlu0 %492
      %v494 = vmul.f32 %v493, %v488
      %v495 = vmul.f32 %v489, %v489
      %v496 = vsub.f32 %v494, %v495
      %v497 = vmax.f32 %v496, 0.0
      %v498 = vsub.f32 %v475, %v489
      %v499 = vadd.f32 %v497, 1e-05
      %v500 = vrsqrt.pop %v499
      %v501 = vmul.f32 %v500, %v499
      %v502 = vmul.f32 %v501, %v500
      %v503 = vmul.f32 0.5, %v502
      %v504 = vsub.f32 1.5, %v503
      %v505 = vmul.f32 %v500, %v504
      %vm506 = vweird.f32 %v499
      %vm507 = vweird.f32 %v500
      %vm508 = vmor %vm506, %vm507
      %v509 = vsel %vm508, %v500, %v505
      %v510 = vmul.f32 %v498, %v509
      %v511 = vpack.c.bf16 %v510, %v510
      %v512 = vpack.c.bf16 %v476, %v476
      %v513 = vpack.c.bf16 %v477, %v477
      %v514 = vunpack.c.l.bf16 %v511
      %v515 = vunpack.c.l.bf16 %v512
      %v516 = vmul.f32 %v514, %v515
      %v517 = vpack.c.bf16 %v516, %v516
      %v518 = vunpack.c.l.bf16 %v517
      %v519 = vunpack.c.l.bf16 %v513
      %v520 = vadd.f32 %v518, %v519
      %v521 = vpack.c.bf16 %v520, %v520
      %v522 = vunpack.c.l.bf16 %v521
      %v523 = vmax.f32 %v522, 0.0
      %v524 = vpack.c.bf16 %v523, %v523
      %v525 = vld [vmem:[%s6] sm:$0xf]
      %v526 = vld [vmem:[%s6 + $0x4] sm:$0xf]
      %v527 = vld [vmem:[%s6 + $0x8] sm:$0xf]
      %v528 = vld [vmem:[%s6 + $0xc] sm:$0xf]
      %v529 = vld [vmem:[%s6 + $0x10] sm:$0xf]
      %v530 = vld [vmem:[%s6 + $0x14] sm:$0xf]
      %v531 = vld [vmem:[%s6 + $0x18] sm:$0xf]
      %v532 = vld [vmem:[%s6 + $0x1c] sm:$0xf]
      %v533 = vld [vmem:[%s9 + $0x3] ss:$0 sm:$0xff]
      %v542 = vunpack.c.l.b16 %v525
      %v543 = vunpack.c.l.b16 %v526
      %v544 = vunpack.c.l.b16 %v527
      %v545 = vunpack.c.l.b16 %v528
      %v546 = vunpack.c.l.b16 %v529
      %v547 = vunpack.c.l.b16 %v530
      %v548 = vunpack.c.l.b16 %v531
      %v549 = vunpack.c.l.b16 %v532
      %v550 = vpack.c.b16 %v543, %v542
      %v551 = vpack.c.b16 %v545, %v544
      %v552 = vpack.c.b16 %v547, %v546
      %v553 = vpack.c.b16 %v549, %v548
      %v559 = vsel %vm478, %v524, 0
      %561 = vmatpush.bf16.msra.mxu0 0
      %562 = vmatpush.bf16.msra.mxu0 0
      %563 = vmatpush.bf16.msra.mxu0 0
      %564 = vmatpush.bf16.msra.mxu0 0
      %565 = vmatpush.bf16.msra.mxu0 %v553
      %566 = vmatpush.bf16.msra.mxu0 %v552
      %567 = vmatpush.bf16.msra.mxu0 %v551
      %568 = vmatpush.bf16.msra.mxu0 %v550
      %569 = vmatmul.bf16.gmra.mxu0 %v559
      %v570 = vpop.f32.mrf.mxu0
      %v571 = vadd.f32 %v533, %v570
      %v572 = vpop.f32.mrf.mxu0
      %573 = vdwg.mxu0
      %v574 = vld [vmem:[%s9 + $0x4] ss:$0 sm:$0xff]
      %v575 = vld [vmem:[%s9 + $0x5] ss:$0 sm:$0xff]
      %576 = vadd.xlane.f32.xlu0 %v571
      %v577 = vpop.xlane.xlu0 %576
      %v578 = vrcp.pop 128.0
      %v579 = vmul.f32 128.0, %v578
      %v580 = vsub.f32 1.0, %v579
      %v581 = vmul.f32 %v578, %v580
      %v582 = vadd.f32 %v578, %v581
      %vm583 = vweird.f32 %v578
      %v584 = vsel %vm583, %v578, %v582
      %v585 = vmul.f32 %v577, %v584
      %v586 = vmul.f32 %v571, %v571
      %587 = vadd.xlane.f32.xlu0 %v586
      %v588 = vpop.xlane.xlu0 %587
      %v589 = vmul.f32 %v588, %v584
      %v590 = vmul.f32 %v585, %v585
      %v591 = vsub.f32 %v589, %v590
      %v592 = vmax.f32 %v591, 0.0
      %v593 = vsub.f32 %v571, %v585
      %v594 = vadd.f32 %v592, 1e-05
      %v595 = vrsqrt.pop %v594
      %v596 = vmul.f32 %v595, %v594
      %v597 = vmul.f32 %v596, %v595
      %v598 = vmul.f32 0.5, %v597
      %v599 = vsub.f32 1.5, %v598
      %v600 = vmul.f32 %v595, %v599
      %vm601 = vweird.f32 %v594
      %vm602 = vweird.f32 %v595
      %vm603 = vmor %vm601, %vm602
      %v604 = vsel %vm603, %v595, %v600
      %v605 = vmul.f32 %v593, %v604
      %v606 = vpack.c.bf16 %v605, %v605
      %v607 = vpack.c.bf16 %v574, %v574
      %v608 = vpack.c.bf16 %v575, %v575
      %v609 = vunpack.c.l.bf16 %v606
      %v610 = vunpack.c.l.bf16 %v607
      %v611 = vmul.f32 %v609, %v610
      %v612 = vpack.c.bf16 %v611, %v611
      %v613 = vunpack.c.l.bf16 %v612
      %v614 = vunpack.c.l.bf16 %v608
      %v615 = vadd.f32 %v613, %v614
      %v616 = vpack.c.bf16 %v615, %v615
      %v617 = vunpack.c.l.bf16 %v616
      %v618 = vmax.f32 %v617, 0.0
      %v619 = vpack.c.bf16 %v618, %v618
      %v620 = vld [vmem:[%s7] sm:$0xff]
      %v621 = vld [vmem:[%s7 + $0x8] sm:$0xff]
      %v622 = vld [vmem:[%s7 + $0x10] sm:$0xff]
      %v623 = vld [vmem:[%s7 + $0x18] sm:$0xff]
      %v624 = vld [vmem:[%s7 + $0x20] sm:$0xff]
      %v625 = vld [vmem:[%s7 + $0x28] sm:$0xff]
      %v626 = vld [vmem:[%s7 + $0x30] sm:$0xff]
      %v627 = vld [vmem:[%s7 + $0x38] sm:$0xff]
      %v628 = vld [vmem:[%s7 + $0x40] sm:$0xff]
      %v629 = vld [vmem:[%s7 + $0x48] sm:$0xff]
      %v630 = vld [vmem:[%s7 + $0x50] sm:$0xff]
      %v631 = vld [vmem:[%s7 + $0x58] sm:$0xff]
      %v632 = vld [vmem:[%s7 + $0x60] sm:$0xff]
      %v633 = vld [vmem:[%s7 + $0x68] sm:$0xff]
      %v634 = vld [vmem:[%s7 + $0x70] sm:$0xff]
      %v635 = vld [vmem:[%s7 + $0x78] sm:$0xff]
      %s636 = scalar_lea.vmem %s9, 6
      %v637 = vld [vmem:[%s636] ss:$8 sm:$0x3]
      %v639 = vperm.slane %v637, 0
      %v640 = vperm.slane %v637, 1
      %v659 = vunpack.c.l.b16 %v620
      %v660 = vunpack.c.h.b16 %v620
      %v661 = vunpack.c.l.b16 %v621
      %v662 = vunpack.c.h.b16 %v621
      %v663 = vunpack.c.l.b16 %v622
      %v664 = vunpack.c.h.b16 %v622
      %v665 = vunpack.c.l.b16 %v623
      %v666 = vunpack.c.h.b16 %v623
      %v667 = vunpack.c.l.b16 %v624
      %v668 = vunpack.c.h.b16 %v624
      %v669 = vunpack.c.l.b16 %v625
      %v670 = vunpack.c.h.b16 %v625
      %v671 = vunpack.c.l.b16 %v626
      %v672 = vunpack.c.h.b16 %v626
      %v673 = vunpack.c.l.b16 %v627
      %v674 = vunpack.c.h.b16 %v627
      %v675 = vunpack.c.l.b16 %v628
      %v676 = vunpack.c.h.b16 %v628
      %v677 = vunpack.c.l.b16 %v629
      %v678 = vunpack.c.h.b16 %v629
      %v679 = vunpack.c.l.b16 %v630
      %v680 = vunpack.c.h.b16 %v630
      %v681 = vunpack.c.l.b16 %v631
      %v682 = vunpack.c.h.b16 %v631
      %v683 = vunpack.c.l.b16 %v632
      %v684 = vunpack.c.h.b16 %v632
      %v685 = vunpack.c.l.b16 %v633
      %v686 = vunpack.c.h.b16 %v633
      %v687 = vunpack.c.l.b16 %v634
      %v688 = vunpack.c.h.b16 %v634
      %v689 = vunpack.c.l.b16 %v635
      %v690 = vunpack.c.h.b16 %v635
      %v691 = vpack.c.b16 %v661, %v659
      %v692 = vpack.c.b16 %v662, %v660
      %v693 = vpack.c.b16 %v665, %v663
      %v694 = vpack.c.b16 %v666, %v664
      %v695 = vpack.c.b16 %v669, %v667
      %v696 = vpack.c.b16 %v670, %v668
      %v697 = vpack.c.b16 %v673, %v671
      %v698 = vpack.c.b16 %v674, %v672
      %v699 = vpack.c.b16 %v677, %v675
      %v700 = vpack.c.b16 %v678, %v676
      %v701 = vpack.c.b16 %v681, %v679
      %v702 = vpack.c.b16 %v682, %v680
      %v703 = vpack.c.b16 %v685, %v683
      %v704 = vpack.c.b16 %v686, %v684
      %v705 = vpack.c.b16 %v689, %v687
      %v706 = vpack.c.b16 %v690, %v688
      %723 = vmatpush.bf16.msra.mxu0 %v705
      %724 = vmatpush.bf16.msra.mxu0 %v703
      %725 = vmatpush.bf16.msra.mxu0 %v701
      %726 = vmatpush.bf16.msra.mxu0 %v699
      %727 = vmatpush.bf16.msra.mxu0 %v697
      %728 = vmatpush.bf16.msra.mxu0 %v695
      %729 = vmatpush.bf16.msra.mxu0 %v693
      %730 = vmatpush.bf16.msra.mxu0 %v691
      %731 = vmatmul.bf16.gmra.mxu0 %v619
      %v732 = vpop.f32.mrf.mxu0
      %v733 = vadd.f32 %v639, %v732
      %v734 = vpop.f32.mrf.mxu0
      %735 = vdwg.mxu0
      %736 = vmatpush.bf16.msra.mxu0 %v706
      %737 = vmatpush.bf16.msra.mxu0 %v704
      %738 = vmatpush.bf16.msra.mxu0 %v702
      %739 = vmatpush.bf16.msra.mxu0 %v700
      %740 = vmatpush.bf16.msra.mxu0 %v698
      %741 = vmatpush.bf16.msra.mxu0 %v696
      %742 = vmatpush.bf16.msra.mxu0 %v694
      %743 = vmatpush.bf16.msra.mxu0 %v692
      %744 = vmatmul.bf16.gmra.mxu0 %v619
      %v745 = vpop.f32.mrf.mxu0
      %v746 = vadd.f32 %v640, %v745
      %v747 = vpop.f32.mrf.mxu0
      %748 = vdwg.mxu0
      %s749 = scalar_lea.vmem %s9, 7
      %v750 = vld [vmem:[%s749] ss:$8 sm:$0x3]
      %s751 = scalar_lea.vmem %s9, 16
      %v752 = vld [vmem:[%s751] ss:$8 sm:$0x3]
      %v753 = vadd.f32 %v733, %v746
      %754 = vadd.xlane.f32.xlu0 %v753
      %v755 = vpop.xlane.xlu0 %754
      %v756 = vrcp.pop 256.0
      %v757 = vmul.f32 256.0, %v756
      %v758 = vsub.f32 1.0, %v757
      %v759 = vmul.f32 %v756, %v758
      %v760 = vadd.f32 %v756, %v759
      %vm761 = vweird.f32 %v756
      %v762 = vsel %vm761, %v756, %v760
      %v763 = vmul.f32 %v755, %v762
      %v764 = vmul.f32 %v733, %v733
      %v765 = vmul.f32 %v746, %v746
      %v766 = vadd.f32 %v764, %v765
      %767 = vadd.xlane.f32.xlu0 %v766
      %v768 = vpop.xlane.xlu0 %767
      %v769 = vmul.f32 %v768, %v762
      %v770 = vmul.f32 %v763, %v763
      %v771 = vsub.f32 %v769, %v770
      %v772 = vmax.f32 %v771, 0.0
      %v773 = vsub.f32 %v733, %v763
      %v774 = vsub.f32 %v746, %v763
      %v775 = vadd.f32 %v772, 1e-05
      %v776 = vrsqrt.pop %v775
      %v777 = vmul.f32 %v776, %v775
      %v778 = vmul.f32 %v777, %v776
      %v779 = vmul.f32 0.5, %v778
      %v780 = vsub.f32 1.5, %v779
      %v781 = vmul.f32 %v776, %v780
      %vm782 = vweird.f32 %v775
      %vm783 = vweird.f32 %v776
      %vm784 = vmor %vm782, %vm783
      %v785 = vsel %vm784, %v776, %v781
      %v786 = vmul.f32 %v773, %v785
      %v787 = vmul.f32 %v774, %v785
      %v788 = vpack.c.bf16 %v787, %v786
      %v790 = vperm.slane %v750, 0
      %v791 = vperm.slane %v750, 1
      %v794 = vpack.c.bf16 %v791, %v790
      %v796 = vperm.slane %v752, 0
      %v797 = vperm.slane %v752, 1
      %v800 = vpack.c.bf16 %v797, %v796
      %v802 = vunpack.c.l.b16 %v794
      %v803 = vunpack.c.h.b16 %v794
      %v804 = vpack.c.b16 %v802, %v802
      %v805 = vpack.c.b16 %v803, %v803
      %v807 = vpack.i.b16 %v804, %v804
      %v809 = vperm.slane %v807, 0
      %v811 = vpack.i.b16 %v805, %v805
      %v813 = vperm.slane %v811, 0
      %v814 = vunpack.c.l.bf16 %v788
      %v815 = vunpack.c.h.bf16 %v788
      %v816 = vunpack.c.l.bf16 %v809
      %v817 = vunpack.c.l.bf16 %v813
      %v818 = vmul.f32 %v814, %v816
      %v819 = vmul.f32 %v815, %v817
      %v820 = vpack.c.bf16 %v819, %v818
      %v822 = vunpack.c.l.b16 %v800
      %v823 = vunpack.c.h.b16 %v800
      %v824 = vpack.c.b16 %v822, %v822
      %v825 = vpack.c.b16 %v823, %v823
      %v827 = vpack.i.b16 %v824, %v824
      %v829 = vperm.slane %v827, 0
      %v831 = vpack.i.b16 %v825, %v825
      %v833 = vperm.slane %v831, 0
      %v834 = vunpack.c.l.bf16 %v820
      %v835 = vunpack.c.h.bf16 %v820
      %v836 = vunpack.c.l.bf16 %v829
      %v837 = vunpack.c.l.bf16 %v833
      %v838 = vadd.f32 %v834, %v836
      %v839 = vadd.f32 %v835, %v837
      %v840 = vpack.c.bf16 %v839, %v838
      %v841 = vunpack.c.l.bf16 %v840
      %v842 = vunpack.c.h.bf16 %v840
      %v843 = vmax.f32 %v841, 0.0
      %v844 = vmax.f32 %v842, 0.0
      %v845 = vpack.c.bf16 %v843, %v843
      %v846 = vpack.c.bf16 %v844, %v844
      %v847 = vld [vmem:[%s8] sm:$0xf]
      %v848 = vld [vmem:[%s8 + $0x4] sm:$0xf]
      %v849 = vld [vmem:[%s8 + $0x8] sm:$0xf]
      %v850 = vld [vmem:[%s8 + $0xc] sm:$0xf]
      %v851 = vld [vmem:[%s8 + $0x10] sm:$0xf]
      %v852 = vld [vmem:[%s8 + $0x14] sm:$0xf]
      %v853 = vld [vmem:[%s8 + $0x18] sm:$0xf]
      %v854 = vld [vmem:[%s8 + $0x1c] sm:$0xf]
      %v855 = vld [vmem:[%s8 + $0x20] sm:$0xf]
      %v856 = vld [vmem:[%s8 + $0x24] sm:$0xf]
      %v857 = vld [vmem:[%s8 + $0x28] sm:$0xf]
      %v858 = vld [vmem:[%s8 + $0x2c] sm:$0xf]
      %v859 = vld [vmem:[%s8 + $0x30] sm:$0xf]
      %v860 = vld [vmem:[%s8 + $0x34] sm:$0xf]
      %v861 = vld [vmem:[%s8 + $0x38] sm:$0xf]
      %v862 = vld [vmem:[%s8 + $0x3c] sm:$0xf]
      %v863 = vld [vmem:[%s8 + $0x40] sm:$0xf]
      %v864 = vld [vmem:[%s8 + $0x44] sm:$0xf]
      %v865 = vld [vmem:[%s8 + $0x48] sm:$0xf]
      %v866 = vld [vmem:[%s8 + $0x4c] sm:$0xf]
      %v867 = vld [vmem:[%s8 + $0x50] sm:$0xf]
      %v868 = vld [vmem:[%s8 + $0x54] sm:$0xf]
      %v869 = vld [vmem:[%s8 + $0x58] sm:$0xf]
      %v870 = vld [vmem:[%s8 + $0x5c] sm:$0xf]
      %v871 = vld [vmem:[%s8 + $0x60] sm:$0xf]
      %v872 = vld [vmem:[%s8 + $0x64] sm:$0xf]
      %v873 = vld [vmem:[%s8 + $0x68] sm:$0xf]
      %v874 = vld [vmem:[%s8 + $0x6c] sm:$0xf]
      %v875 = vld [vmem:[%s8 + $0x70] sm:$0xf]
      %v876 = vld [vmem:[%s8 + $0x74] sm:$0xf]
      %v877 = vld [vmem:[%s8 + $0x78] sm:$0xf]
      %v878 = vld [vmem:[%s8 + $0x7c] sm:$0xf]
      %v879 = vld [vmem:[%s9 + $0x11] ss:$0 sm:$0xff]
      %v912 = vunpack.c.l.b16 %v847
      %v913 = vunpack.c.l.b16 %v848
      %v914 = vunpack.c.l.b16 %v849
      %v915 = vunpack.c.l.b16 %v850
      %v916 = vunpack.c.l.b16 %v851
      %v917 = vunpack.c.l.b16 %v852
      %v918 = vunpack.c.l.b16 %v853
      %v919 = vunpack.c.l.b16 %v854
      %v920 = vunpack.c.l.b16 %v855
      %v921 = vunpack.c.l.b16 %v856
      %v922 = vunpack.c.l.b16 %v857
      %v923 = vunpack.c.l.b16 %v858
      %v924 = vunpack.c.l.b16 %v859
      %v925 = vunpack.c.l.b16 %v860
      %v926 = vunpack.c.l.b16 %v861
      %v927 = vunpack.c.l.b16 %v862
      %v928 = vunpack.c.l.b16 %v863
      %v929 = vunpack.c.l.b16 %v864
      %v930 = vunpack.c.l.b16 %v865
      %v931 = vunpack.c.l.b16 %v866
      %v932 = vunpack.c.l.b16 %v867
      %v933 = vunpack.c.l.b16 %v868
      %v934 = vunpack.c.l.b16 %v869
      %v935 = vunpack.c.l.b16 %v870
      %v936 = vunpack.c.l.b16 %v871
      %v937 = vunpack.c.l.b16 %v872
      %v938 = vunpack.c.l.b16 %v873
      %v939 = vunpack.c.l.b16 %v874
      %v940 = vunpack.c.l.b16 %v875
      %v941 = vunpack.c.l.b16 %v876
      %v942 = vunpack.c.l.b16 %v877
      %v943 = vunpack.c.l.b16 %v878
      %v944 = vpack.c.b16 %v913, %v912
      %v945 = vpack.c.b16 %v915, %v914
      %v946 = vpack.c.b16 %v917, %v916
      %v947 = vpack.c.b16 %v919, %v918
      %v948 = vpack.c.b16 %v921, %v920
      %v949 = vpack.c.b16 %v923, %v922
      %v950 = vpack.c.b16 %v925, %v924
      %v951 = vpack.c.b16 %v927, %v926
      %v952 = vpack.c.b16 %v929, %v928
      %v953 = vpack.c.b16 %v931, %v930
      %v954 = vpack.c.b16 %v933, %v932
      %v955 = vpack.c.b16 %v935, %v934
      %v956 = vpack.c.b16 %v937, %v936
      %v957 = vpack.c.b16 %v939, %v938
      %v958 = vpack.c.b16 %v941, %v940
      %v959 = vpack.c.b16 %v943, %v942
      %976 = vmatpush.bf16.msra.mxu0 %v951
      %977 = vmatpush.bf16.msra.mxu0 %v950
      %978 = vmatpush.bf16.msra.mxu0 %v949
      %979 = vmatpush.bf16.msra.mxu0 %v948
      %980 = vmatpush.bf16.msra.mxu0 %v947
      %981 = vmatpush.bf16.msra.mxu0 %v946
      %982 = vmatpush.bf16.msra.mxu0 %v945
      %983 = vmatpush.bf16.msra.mxu0 %v944
      %984 = vmatmul.bf16.gmra.mxu0 %v845
      %v985 = vpop.f32.mrf.mxu0
      %v986 = vadd.f32 %v879, %v985
      %v987 = vpop.f32.mrf.mxu0
      %988 = vdwg.mxu0
      %989 = vmatpush.bf16.msra.mxu0 %v959
      %990 = vmatpush.bf16.msra.mxu0 %v958
      %991 = vmatpush.bf16.msra.mxu0 %v957
      %992 = vmatpush.bf16.msra.mxu0 %v956
      %993 = vmatpush.bf16.msra.mxu0 %v955
      %994 = vmatpush.bf16.msra.mxu0 %v954
      %995 = vmatpush.bf16.msra.mxu0 %v953
      %996 = vmatpush.bf16.msra.mxu0 %v952
      %997 = vmatmul.bf16.gmra.mxu0 %v846
      %v998 = vpop.f32.mrf.mxu0
      %v999 = vadd.f32 %v986, %v998
      %v1000 = vpop.f32.mrf.mxu0
      %1001 = vdwg.mxu0
      %v1002 = vld [vmem:[%s9 + $0x12] ss:$0 sm:$0xff]
      %v1003 = vld [vmem:[%s9 + $0x13] ss:$0 sm:$0xff]
      %vm1004 = vcmask 31744
      %v1005 = vsel %vm1004, %v999, 0.0
      %1006 = vadd.xlane.f32.xlu0 %v1005
      %v1007 = vpop.xlane.xlu0 %1006
      %v1008 = vrcp.pop 4.0
      %v1009 = vmul.f32 4.0, %v1008
      %v1010 = vsub.f32 1.0, %v1009
      %v1011 = vmul.f32 %v1008, %v1010
      %v1012 = vadd.f32 %v1008, %v1011
      %vm1013 = vweird.f32 %v1008
      %v1014 = vsel %vm1013, %v1008, %v1012
      %v1015 = vmul.f32 %v1007, %v1014
      %v1016 = vsub.f32 %v999, %v1015
      %v1017 = vmul.f32 %v1016, %v1016
      %v1018 = vsel %vm1004, %v1017, 0.0
      %1019 = vadd.xlane.f32.xlu0 %v1018
      %v1020 = vpop.xlane.xlu0 %1019
      %v1021 = vmul.f32 %v1020, %v1014
      %v1022 = vadd.f32 %v1021, 1e-05
      %v1023 = vrsqrt.pop %v1022
      %v1024 = vmul.f32 %v1023, %v1022
      %v1025 = vmul.f32 %v1024, %v1023
      %v1026 = vmul.f32 0.5, %v1025
      %v1027 = vsub.f32 1.5, %v1026
      %v1028 = vmul.f32 %v1023, %v1027
      %vm1029 = vweird.f32 %v1022
      %vm1030 = vweird.f32 %v1023
      %vm1031 = vmor %vm1029, %vm1030
      %v1032 = vsel %vm1031, %v1023, %v1028
      %v1033 = vmul.f32 %v1016, %v1032
      %v1034 = vmul.f32 %v1033, %v1002
      %v1035 = vadd.f32 %v1034, %v1003
      %v1036 = vld [vmem:[%s401] sm:$0xff]
      %v1037 = vsel %vm408, 1, 0
      %1038 = vset.pattern.permute.xlu0 0
      %1039 = vperm.xlu0 %1038, %v1037
      %v1040 = vpop.permute.xlu0 %1039
      %vm1041 = vcmp.eq.s32.totalorder %v1040, 1
      %v1042 = vsel %vm1041, %v1036, %v1035
      %1043 = vst.msk [vmem:[%s405] sm:$0xff] %vm1004, %v1042
      %p1044 = scmp.lt.s32.totalorder %s21, 3
      %s1045 = scalar_select %p1044, %s21, 3
      %s1046 = smul.addr %s1045, 8
      %s1047 = scalar_lea.vmem %s10, %s1046
      // Predicated region
      $region61: #{pointcloud_encoder.1} parent=59 // pred_check
        %p1048 = pneg %p269
      $region62: #{pointcloud_encoder.1} parent=59 // pred_check_branch
        %1050 = sbr.rel (%p1048) target = $region64
      $region63: #{pointcloud_encoder.1} parent=59 // pred_region
        _
      $region64: #{pointcloud_encoder.1} parent=59 // pred_fallthru
        _
    $region60: #{pointcloud_encoder.1} parent=5 // pred_fallthru
      _
    %p1051 = scmp.le.s32.totalorder 2, %s16
    // Predicated region
    $region65: #{pointcloud_encoder.1} parent=5 // pred_check
      %p1052 = pneg %p1051
    $region66: #{pointcloud_encoder.1} parent=5 // pred_check_branch
      %1054 = sbr.rel (%p1052) target = $region68
    $region67: #{pointcloud_encoder.1} parent=5 // pred_region
      %s1055 = ssub.s32 %s16, 2
      // Predicated region
      $region69: #{pointcloud_encoder.1} parent=67 // pred_check
        %p1056 = pneg %p275
      $region70: #{pointcloud_encoder.1} parent=67 // pred_check_branch
        %1058 = sbr.rel (%p1056) target = $region72
      $region71: #{pointcloud_encoder.1} parent=67 // pred_region
        %p1059 = scmp.lt.s32.totalorder %s22, 3
        %s1060 = scalar_select %p1059, %s22, 3
        %s1061 = smul.addr %s1060, 8
        %s1062 = scalar_lea.vmem %s10, %s1061
      $region72: #{pointcloud_encoder.1} parent=67 // pred_fallthru
        _
    $region68: #{pointcloud_encoder.1} parent=5 // pred_fallthru
      _
  $region6: #{pointcloud_encoder.1} parent=0 // loop_footer
    %s20 = sadd.s32 1, %s16
  $region7: #{pointcloud_encoder.1} parent=0 // loop_footer_branch
    %15 = sbr.rel target = $region3
  $region8: #{pointcloud_encoder.1} parent=0 // loop_exit
    _

</llo_original>
